<compile_context>
chip_gen: v7x
topology: tpu7x:2x2x1
jax: 0.10.0
libtpu: 0.0.40
codegen_flags: <defaults>
</compile_context>

<pallas_src>
import functools

import jax
import jax.numpy as jnp
from jax.experimental import pallas as pl
from jax.experimental.pallas import tpu as pltpu


def _top1_max_kernel(*refs, term_dtype):
    """One (TM, B) row tile -> one (8, 128) partial-sum tile (only [0, 0] is nonzero)."""
    if len(refs) == 3:
        logit_ref, diag_blk_ref, out_ref = refs          # multi-tile: (TM, TM) diag block
    else:
        logit_ref, out_ref = refs                        # single tile: diag comes from x
        diag_blk_ref = None

    i = pl.program_id(0)
    tm, b = logit_ref.shape                              # block shape; b == total rows (square)
    has_remainder = (b % tm) != 0                        # static: last tile is partial?

    x = logit_ref[...].astype(jnp.float32)               # (tm, b)

    if has_remainder:
        # Mask rows past the end of the array; padded block contents are unspecified.
        rows_g = jax.lax.broadcasted_iota(jnp.int32, (tm, 1), 0) + i * tm
        row_valid = rows_g < b
        x = jnp.where(row_valid, x, 0.0)                 # keep padded-row math finite

    # ---- stable softmax numerator / denominator (the only per-element exp) ----------
    m = jnp.max(x, axis=1, keepdims=True)                # (tm, 1)
    e = jnp.exp(x - m)                                   # (tm, b)   EUP push #1 / element
    sum_e = jnp.sum(e, axis=1, keepdims=True)            # (tm, 1)

    # ---- diagonal via masked reduce over the (tm, tm) diagonal block only ------------
    if diag_blk_ref is None:
        xd = x                                           # single tile: the tile IS the diag block
    else:
        xd = diag_blk_ref[...].astype(jnp.float32)       # (tm, tm)
    tmc = xd.shape[1]
    rloc = jax.lax.broadcasted_iota(jnp.int32, (tm, tmc), 0)
    cloc = jax.lax.broadcasted_iota(jnp.int32, (tm, tmc), 1)
    diag = jnp.sum(jnp.where(rloc == cloc, xd, 0.0), axis=1, keepdims=True)  # (tm, 1)

    # ---- terms: sigmoid(x - diag) + sigmoid(x^2) = 0.5*(tanh(h - hd) + tanh(h*x)) + 1 -
    xc = x.astype(term_dtype)
    h = 0.5 * xc                                         # (tm, b)
    hd = (0.5 * diag).astype(term_dtype)                 # (tm, 1)
    t = jnp.tanh(h - hd) + jnp.tanh(h * xc)              # EUP pushes #2 and #3 / element
    row_s = jnp.sum(e * t.astype(jnp.float32), axis=1, keepdims=True)        # (tm, 1)

    # sum_j softmax_ij * term_ij = 0.5 * row_s / sum_e + 1   (softmax rows sum to 1)
    row_contrib = 0.5 * row_s * pl.reciprocal(sum_e, approx=True) + 1.0
    if has_remainder:
        row_contrib = jnp.where(row_valid, row_contrib, 0.0)
    partial = jnp.sum(row_contrib)                       # scalar f32

    # Write the per-step partial into its own (8, 128) output tile (position [0, 0]).
    r0 = jax.lax.broadcasted_iota(jnp.int32, (8, 128), 0)
    c0 = jax.lax.broadcasted_iota(jnp.int32, (8, 128), 1)
    out_ref[...] = jnp.where((r0 == 0) & (c0 == 0), partial, 0.0)


def _choose_tm(B: int) -> int:
    """Row-tile size: lane-aligned (multiple of 128), >= ~8 grid steps for moderate B,
    per-buffer f32 tile capped at ~2 MiB so intermediates fit v7x's smaller VMEM."""
    if B <= 256:
        return B                                         # whole matrix is <= 256 KiB; one tile
    budget = 2 * 1024 * 1024                             # bytes per (tm, B) f32 input buffer
    tm = min(B // 8, budget // (4 * B))
    tm = max(128, (tm // 128) * 128)
    return B if tm >= B else tm


def _sanitize_tm(B: int, tm) -> int:
    if tm is None:
        return _choose_tm(B)
    tm = min(int(tm), B)
    if tm >= B:
        return B
    # Sub-matrix row tiles must be (8, 128)-friendly for the (tm, tm) diagonal block spec.
    tm = max(128, (tm // 128) * 128)
    return B if tm >= B else tm


def _default_term_dtype():
    # bf16 EUP/VPU exists on v6e/v7x; on v5e and older bf16 only adds convert ops.
    try:
        kind = jax.devices()[0].device_kind.lower()
    except Exception:
        return jnp.float32
    if ("v6" in kind) or ("v7" in kind) or ("tpu7" in kind):
        return jnp.bfloat16
    return jnp.float32


@functools.partial(jax.jit, static_argnames=("tm", "term_dtype"))
def top1_max_loss(logit: jax.Array, tm=None, term_dtype=None) -> jax.Array:
    B = logit.shape[0]
    assert logit.ndim == 2 and logit.shape == (B, B), "TOP1_max expects a square (B, B) logit"
    tm = _sanitize_tm(B, tm)
    if term_dtype is None:
        term_dtype = _default_term_dtype()
    n_steps = pl.cdiv(B, tm)

    in_specs = [pl.BlockSpec((tm, B), lambda i: (i, 0))]
    operands = [logit]
    if tm < B:
        # Second view of the SAME array: only the (tm, tm) diagonal block of row tile i.
        in_specs.append(pl.BlockSpec((tm, tm), lambda i: (i, i)))
        operands.append(logit)

    partials = pl.pallas_call(
        functools.partial(_top1_max_kernel, term_dtype=term_dtype),
        out_shape=jax.ShapeDtypeStruct((n_steps * 8, 128), jnp.float32),
        grid=(n_steps,),
        in_specs=in_specs,
        out_specs=pl.BlockSpec((8, 128), lambda i: (i, 0)),
        compiler_params=pltpu.CompilerParams(
            dimension_semantics=("parallel",),           # per-step partials -> megacore-safe
            vmem_limit_bytes=32 * 1024 * 1024,
        ),
        cost_estimate=pl.CostEstimate(
            flops=10 * B * B,
            transcendentals=3 * B * B,
            bytes_accessed=logit.dtype.itemsize * (B * B + n_steps * tm * tm)
            + n_steps * 8 * 128 * 4,
        ),
    )(*operands)

    # Only [8*i, 0] entries are nonzero; summing everything is exact.
    return jnp.sum(partials) / jnp.float32(B * B)


class LossFunction:
    """JAX/Pallas port of GRU4REC LossFunction(loss_type='TOP1_max'). No parameters."""

    def __init__(self, loss_type: str = "TOP1_max"):
        assert loss_type == "TOP1_max"

    def __call__(self, logit: jax.Array) -> jax.Array:
        return top1_max_loss(logit)


def _reference(logit):
    x = logit.astype(jnp.float32)
    sm = jax.nn.softmax(x, axis=1)
    diag = jnp.diag(x)[:, None]
    return jnp.mean(sm * (jax.nn.sigmoid(x - diag) + jax.nn.sigmoid(x * x)))


if __name__ == "__main__":
    key = jax.random.PRNGKey(0)
    loss_fn = LossFunction("TOP1_max")
    default_dt = _default_term_dtype()

    # (B, tm, term_dtype):
    #   single-tile default, multi-tile divisible (forced f32 terms),
    #   auto tile chooser multi-tile, and a partial last tile (remainder masking path).
    cases = (
        (256, None, None),
        (384, 128, jnp.float32),
        (512, None, None),
        (200, 128, None),
    )
    for idx, (B, tm, dt) in enumerate(cases):
        logit = jax.random.normal(jax.random.fold_in(key, idx), (B, B), dtype=jnp.float32)
        if tm is None and dt is None:
            loss = loss_fn(logit)
        else:
            loss = top1_max_loss(logit, tm=tm, term_dtype=dt)
        loss = jax.block_until_ready(loss)
        ref = jax.block_until_ready(_reference(logit))
        used_dt = dt if dt is not None else default_dt
        rtol = 3e-2 if used_dt == jnp.bfloat16 else 2e-3   # bf16 term math is intentionally lossy
        assert jnp.allclose(loss, ref, rtol=rtol, atol=1e-5), (B, tm, used_dt, loss, ref)

    print("KERNEL_OK")
</pallas_src>

<mosaic_0001>
module attributes {stable_mosaic.version = 11 : i64} {
  func.func @_top1_max_kernel(%arg0: i32, %arg1: memref<256x256xf32, #tpu.memory_space<vmem>>, %arg2: memref<8x128xf32, #tpu.memory_space<vmem>>) attributes {dimension_semantics = [#tpu.dimension_semantics<parallel>], iteration_bounds = array<i64: 1>, scalar_prefetch = 0 : i64, scratch_operands = 0 : i64, tpu.core_type = #tpu.core_type<tc>, window_params = [{transform_indices = @transform_0, window_bounds = array<i64: 256, 256>}, {transform_indices = @transform_1, window_bounds = array<i64: 8, 128>}]} {
    %c0 = arith.constant 0 : index
    %c0_0 = arith.constant 0 : index
    %0 = vector.load %arg1[%c0, %c0_0] : memref<256x256xf32, #tpu.memory_space<vmem>>, vector<256x256xf32>
    %cst = arith.constant dense<0xFF800000> : vector<256xf32>
    %1 = vector.multi_reduction <maximumf>, %0, %cst [1] : vector<256x256xf32> to vector<256xf32>
    %2 = vector.shape_cast %1 : vector<256xf32> to vector<256x1xf32>
    %3 = vector.broadcast %2 : vector<256x1xf32> to vector<256x256xf32>
    %4 = arith.subf %0, %3 : vector<256x256xf32>
    %5 = math.exp %4 : vector<256x256xf32>
    %cst_1 = arith.constant dense<0.000000e+00> : vector<256xf32>
    %6 = vector.multi_reduction <add>, %5, %cst_1 [1] : vector<256x256xf32> to vector<256xf32>
    %7 = vector.shape_cast %6 : vector<256xf32> to vector<256x1xf32>
    %8 = tpu.iota {dimensions = array<i32: 0>} : vector<256x256xi32>
    %9 = tpu.iota {dimensions = array<i32: 1>} : vector<256x256xi32>
    %10 = arith.cmpi eq, %8, %9 : vector<256x256xi32>
    %cst_2 = arith.constant 0.000000e+00 : f32
    %11 = vector.broadcast %cst_2 : f32 to vector<256x256xf32>
    %12 = arith.select %10, %0, %11 : vector<256x256xi1>, vector<256x256xf32>
    %cst_3 = arith.constant dense<0.000000e+00> : vector<256xf32>
    %13 = vector.multi_reduction <add>, %12, %cst_3 [1] : vector<256x256xf32> to vector<256xf32>
    %14 = vector.shape_cast %13 : vector<256xf32> to vector<256x1xf32>
    %cst_4 = arith.constant 5.000000e-01 : f32
    %15 = vector.broadcast %cst_4 : f32 to vector<256x256xf32>
    %16 = arith.mulf %15, %0 : vector<256x256xf32>
    %cst_5 = arith.constant 5.000000e-01 : f32
    %17 = vector.broadcast %cst_5 : f32 to vector<256x1xf32>
    %18 = arith.mulf %17, %14 : vector<256x1xf32>
    %19 = vector.broadcast %18 : vector<256x1xf32> to vector<256x256xf32>
    %20 = arith.subf %16, %19 : vector<256x256xf32>
    %21 = math.tanh %20 : vector<256x256xf32>
    %22 = arith.mulf %16, %0 : vector<256x256xf32>
    %23 = math.tanh %22 : vector<256x256xf32>
    %24 = arith.addf %21, %23 : vector<256x256xf32>
    %25 = arith.mulf %5, %24 : vector<256x256xf32>
    %cst_6 = arith.constant dense<0.000000e+00> : vector<256xf32>
    %26 = vector.multi_reduction <add>, %25, %cst_6 [1] : vector<256x256xf32> to vector<256xf32>
    %27 = vector.shape_cast %26 : vector<256xf32> to vector<256x1xf32>
    %cst_7 = arith.constant 5.000000e-01 : f32
    %28 = vector.broadcast %cst_7 : f32 to vector<256x1xf32>
    %29 = arith.mulf %28, %27 : vector<256x1xf32>
    %30 = tpu.reciprocal %7 {approx = true} : vector<256x1xf32> -> vector<256x1xf32>
    %31 = arith.mulf %29, %30 : vector<256x1xf32>
    %cst_8 = arith.constant 1.000000e+00 : f32
    %32 = vector.broadcast %cst_8 : f32 to vector<256x1xf32>
    %33 = arith.addf %31, %32 : vector<256x1xf32>
    %34 = vector.shape_cast %33 : vector<256x1xf32> to vector<1x256x1xf32>
    %cst_9 = arith.constant dense<0.000000e+00> : vector<1xf32>
    %35 = vector.multi_reduction <add>, %34, %cst_9 [1, 2] : vector<1x256x1xf32> to vector<1xf32>
    %36 = vector.shape_cast %35 : vector<1xf32> to vector<1x1x1xf32>
    %37 = vector.extract %36[0, 0, 0] : f32 from vector<1x1x1xf32>
    %38 = tpu.iota {dimensions = array<i32: 0>} : vector<8x128xi32>
    %39 = tpu.iota {dimensions = array<i32: 1>} : vector<8x128xi32>
    %c0_i32 = arith.constant 0 : i32
    %40 = vector.broadcast %c0_i32 : i32 to vector<8x128xi32>
    %41 = arith.cmpi eq, %38, %40 : vector<8x128xi32>
    %c0_i32_10 = arith.constant 0 : i32
    %42 = vector.broadcast %c0_i32_10 : i32 to vector<8x128xi32>
    %43 = arith.cmpi eq, %39, %42 : vector<8x128xi32>
    %44 = arith.andi %41, %43 : vector<8x128xi1>
    %cst_11 = arith.constant 0.000000e+00 : f32
    %45 = vector.broadcast %37 : f32 to vector<8x128xf32>
    %46 = vector.broadcast %cst_11 : f32 to vector<8x128xf32>
    %47 = arith.select %44, %45, %46 : vector<8x128xi1>, vector<8x128xf32>
    %c0_12 = arith.constant 0 : index
    %c0_13 = arith.constant 0 : index
    %48 = vector.load %arg2[%c0_12, %c0_13] : memref<8x128xf32, #tpu.memory_space<vmem>>, vector<8x128xf32>
    tpu.vector_store %arg2[%c0_12, %c0_13], %47 {strides = array<i32>} : memref<8x128xf32, #tpu.memory_space<vmem>>, vector<8x128xf32>,
    return
  }
  func.func @transform_0(%arg0: i32) -> (i32, i32) {
    %c0_i32 = arith.constant 0 : i32
    %c0_i32_0 = arith.constant 0 : i32
    return %arg0, %c0_i32 : i32, i32
  }
  func.func @transform_1(%arg0: i32) -> (i32, i32) {
    %c0_i32 = arith.constant 0 : i32
    %c0_i32_0 = arith.constant 0 : i32
    return %arg0, %c0_i32 : i32, i32
  }
}

</mosaic_0001>

<llo_original>
// kernel: top1_max_loss.1
$region0: #{top1_max_loss.1}
  #allocation0 [shape = 'u32[]', space=smem, size = 0x4, offset = 0x4, fixed_abs, tag = 'smem constant byte address 0x4 - core index']
  #allocation1 [shape = 'u32[144,128]{1,0:T(1,128)}', space=vmem, size = 0x12000, scoped, tag = 'internal scratch']
  %s0 = inlined_call_operand.hbm [shape: f32[256,256], index: 0, kind: input, shape index: {}]
  %s1 = inlined_call_operand.vmem [shape: f32[8,128], index: 1, kind: output, shape index: {}]
  %s2 = sld [smem:[#allocation0]]
  $region18: #{top1_max_loss.1} parent=0
    _
  %s4 = ssub.s32 1, %s2
  %s5 = scalar_select 0, %s4, %s2
  $region1: #{top1_max_loss.1} parent=0
    #allocation2 [shape = 'u8[262144]{0}', space=vmem, size = 0x40000, scoped, tag = 'input window, operand 0, single buffered']
    #allocation3 [shape = 's32[1]{0}', space=sflag, size = 0x4, scoped, tag = 'scoped memory for top1_max_loss.1']
    %6 = vsyncpa [#allocation3], 0
    // Predicated region
    $region2: #{top1_max_loss.1} parent=1 // pred_check
      _
    $region3: #{top1_max_loss.1} parent=1 // pred_check_branch
      %8 = sbr.rel (0) target = $region5
    $region4: #{top1_max_loss.1} parent=1 // pred_region
      %s10 = ssub.s32 8192, 8192
      %11 = vsyncadd [#allocation3], %s10
      %s12 = sshll.u32 [#allocation2], 4
      %s13 = int_to_ptr.vmem [resolvable:$true] %s12
      %18 = dma.hbm_to_vmem [thread:$0]  %s0, 8192, %s13, [#allocation3], 256, 256, 16
    $region5: #{top1_max_loss.1} parent=1 // pred_fallthru
      _
    // Predicated region
    $region6: #{top1_max_loss.1} parent=1 // pred_check
      _
    $region7: #{top1_max_loss.1} parent=1 // pred_check_branch
      %20 = sbr.rel (0) target = $region9
    $region8: #{top1_max_loss.1} parent=1 // pred_region
      %21 = dma.done [#allocation3], 8192
    $region9: #{top1_max_loss.1} parent=1 // pred_fallthru
      _
    %v22 = vld [vmem:[#allocation2] sm:$0xff]
    %v23 = vld [vmem:[#allocation2 + $0x8] sm:$0xff]
    %v24 = vld [vmem:[#allocation2 + $0x10] sm:$0xff]
    %v25 = vld [vmem:[#allocation2 + $0x18] sm:$0xff]
    %v26 = vld [vmem:[#allocation2 + $0x20] sm:$0xff]
    %v27 = vld [vmem:[#allocation2 + $0x28] sm:$0xff]
    %v28 = vld [vmem:[#allocation2 + $0x30] sm:$0xff]
    %v29 = vld [vmem:[#allocation2 + $0x38] sm:$0xff]
    %v30 = vld [vmem:[#allocation2 + $0x40] sm:$0xff]
    %v31 = vld [vmem:[#allocation2 + $0x48] sm:$0xff]
    %v32 = vld [vmem:[#allocation2 + $0x50] sm:$0xff]
    %v33 = vld [vmem:[#allocation2 + $0x58] sm:$0xff]
    %v34 = vld [vmem:[#allocation2 + $0x60] sm:$0xff]
    %v35 = vld [vmem:[#allocation2 + $0x68] sm:$0xff]
    %v36 = vld [vmem:[#allocation2 + $0x70] sm:$0xff]
    %v37 = vld [vmem:[#allocation2 + $0x78] sm:$0xff]
    %v38 = vld [vmem:[#allocation2 + $0x80] sm:$0xff]
    %v39 = vld [vmem:[#allocation2 + $0x88] sm:$0xff]
    %v40 = vld [vmem:[#allocation2 + $0x90] sm:$0xff]
    %v41 = vld [vmem:[#allocation2 + $0x98] sm:$0xff]
    %v42 = vld [vmem:[#allocation2 + $0xa0] sm:$0xff]
    %v43 = vld [vmem:[#allocation2 + $0xa8] sm:$0xff]
    %v44 = vld [vmem:[#allocation2 + $0xb0] sm:$0xff]
    %v45 = vld [vmem:[#allocation2 + $0xb8] sm:$0xff]
    %v46 = vld [vmem:[#allocation2 + $0xc0] sm:$0xff]
    %v47 = vld [vmem:[#allocation2 + $0xc8] sm:$0xff]
    %v48 = vld [vmem:[#allocation2 + $0xd0] sm:$0xff]
    %v49 = vld [vmem:[#allocation2 + $0xd8] sm:$0xff]
    %v50 = vld [vmem:[#allocation2 + $0xe0] sm:$0xff]
    %v51 = vld [vmem:[#allocation2 + $0xe8] sm:$0xff]
    %v52 = vld [vmem:[#allocation2 + $0xf0] sm:$0xff]
    %v53 = vld [vmem:[#allocation2 + $0xf8] sm:$0xff]
    %v54 = vld [vmem:[#allocation2 + $0x100] sm:$0xff]
    %v55 = vld [vmem:[#allocation2 + $0x108] sm:$0xff]
    %v56 = vld [vmem:[#allocation2 + $0x110] sm:$0xff]
    %v57 = vld [vmem:[#allocation2 + $0x118] sm:$0xff]
    %v58 = vld [vmem:[#allocation2 + $0x120] sm:$0xff]
    %v59 = vld [vmem:[#allocation2 + $0x128] sm:$0xff]
    %v60 = vld [vmem:[#allocation2 + $0x130] sm:$0xff]
    %v61 = vld [vmem:[#allocation2 + $0x138] sm:$0xff]
    %v62 = vld [vmem:[#allocation2 + $0x140] sm:$0xff]
    %v63 = vld [vmem:[#allocation2 + $0x148] sm:$0xff]
    %v64 = vld [vmem:[#allocation2 + $0x150] sm:$0xff]
    %v65 = vld [vmem:[#allocation2 + $0x158] sm:$0xff]
    %v66 = vld [vmem:[#allocation2 + $0x160] sm:$0xff]
    %v67 = vld [vmem:[#allocation2 + $0x168] sm:$0xff]
    %v68 = vld [vmem:[#allocation2 + $0x170] sm:$0xff]
    %v69 = vld [vmem:[#allocation2 + $0x178] sm:$0xff]
    %v70 = vld [vmem:[#allocation2 + $0x180] sm:$0xff]
    %v71 = vld [vmem:[#allocation2 + $0x188] sm:$0xff]
    %v72 = vld [vmem:[#allocation2 + $0x190] sm:$0xff]
    %v73 = vld [vmem:[#allocation2 + $0x198] sm:$0xff]
    %v74 = vld [vmem:[#allocation2 + $0x1a0] sm:$0xff]
    %v75 = vld [vmem:[#allocation2 + $0x1a8] sm:$0xff]
    %v76 = vld [vmem:[#allocation2 + $0x1b0] sm:$0xff]
    %v77 = vld [vmem:[#allocation2 + $0x1b8] sm:$0xff]
    %v78 = vld [vmem:[#allocation2 + $0x1c0] sm:$0xff]
    %v79 = vld [vmem:[#allocation2 + $0x1c8] sm:$0xff]
    %v80 = vld [vmem:[#allocation2 + $0x1d0] sm:$0xff]
    %v81 = vld [vmem:[#allocation2 + $0x1d8] sm:$0xff]
    %v82 = vld [vmem:[#allocation2 + $0x1e0] sm:$0xff]
    %v83 = vld [vmem:[#allocation2 + $0x1e8] sm:$0xff]
    %v84 = vld [vmem:[#allocation2 + $0x1f0] sm:$0xff]
    %v85 = vld [vmem:[#allocation2 + $0x1f8] sm:$0xff]
    %v86 = vmax.f32 %v22, %v23
    %87 = vmax.xlane.f32.xlu0 %v86
    %v88 = vpop.xlane.xlu0 %87
    %v89 = vmax.f32 %v24, %v25
    %90 = vmax.xlane.f32.xlu0 %v89
    %v91 = vpop.xlane.xlu0 %90
    %v92 = vmax.f32 %v26, %v27
    %93 = vmax.xlane.f32.xlu0 %v92
    %v94 = vpop.xlane.xlu0 %93
    %v95 = vmax.f32 %v28, %v29
    %96 = vmax.xlane.f32.xlu0 %v95
    %v97 = vpop.xlane.xlu0 %96
    %v98 = vmax.f32 %v30, %v31
    %99 = vmax.xlane.f32.xlu0 %v98
    %v100 = vpop.xlane.xlu0 %99
    %v101 = vmax.f32 %v32, %v33
    %102 = vmax.xlane.f32.xlu0 %v101
    %v103 = vpop.xlane.xlu0 %102
    %v104 = vmax.f32 %v34, %v35
    %105 = vmax.xlane.f32.xlu0 %v104
    %v106 = vpop.xlane.xlu0 %105
    %v107 = vmax.f32 %v36, %v37
    %108 = vmax.xlane.f32.xlu0 %v107
    %v109 = vpop.xlane.xlu0 %108
    %v110 = vmax.f32 %v38, %v39
    %111 = vmax.xlane.f32.xlu0 %v110
    %v112 = vpop.xlane.xlu0 %111
    %v113 = vmax.f32 %v40, %v41
    %114 = vmax.xlane.f32.xlu0 %v113
    %v115 = vpop.xlane.xlu0 %114
    %v116 = vmax.f32 %v42, %v43
    %117 = vmax.xlane.f32.xlu0 %v116
    %v118 = vpop.xlane.xlu0 %117
    %v119 = vmax.f32 %v44, %v45
    %120 = vmax.xlane.f32.xlu0 %v119
    %v121 = vpop.xlane.xlu0 %120
    %v122 = vmax.f32 %v46, %v47
    %123 = vmax.xlane.f32.xlu0 %v122
    %v124 = vpop.xlane.xlu0 %123
    %v125 = vmax.f32 %v48, %v49
    %126 = vmax.xlane.f32.xlu0 %v125
    %v127 = vpop.xlane.xlu0 %126
    %v128 = vmax.f32 %v50, %v51
    %129 = vmax.xlane.f32.xlu0 %v128
    %v130 = vpop.xlane.xlu0 %129
    %v131 = vmax.f32 %v52, %v53
    %132 = vmax.xlane.f32.xlu0 %v131
    %v133 = vpop.xlane.xlu0 %132
    %v134 = vmax.f32 %v54, %v55
    %135 = vmax.xlane.f32.xlu0 %v134
    %v136 = vpop.xlane.xlu0 %135
    %v137 = vmax.f32 %v56, %v57
    %138 = vmax.xlane.f32.xlu0 %v137
    %v139 = vpop.xlane.xlu0 %138
    %v140 = vmax.f32 %v58, %v59
    %141 = vmax.xlane.f32.xlu0 %v140
    %v142 = vpop.xlane.xlu0 %141
    %v143 = vmax.f32 %v60, %v61
    %144 = vmax.xlane.f32.xlu0 %v143
    %v145 = vpop.xlane.xlu0 %144
    %v146 = vmax.f32 %v62, %v63
    %147 = vmax.xlane.f32.xlu0 %v146
    %v148 = vpop.xlane.xlu0 %147
    %v149 = vmax.f32 %v64, %v65
    %150 = vmax.xlane.f32.xlu0 %v149
    %v151 = vpop.xlane.xlu0 %150
    %v152 = vmax.f32 %v66, %v67
    %153 = vmax.xlane.f32.xlu0 %v152
    %v154 = vpop.xlane.xlu0 %153
    %v155 = vmax.f32 %v68, %v69
    %156 = vmax.xlane.f32.xlu0 %v155
    %v157 = vpop.xlane.xlu0 %156
    %v158 = vmax.f32 %v70, %v71
    %159 = vmax.xlane.f32.xlu0 %v158
    %v160 = vpop.xlane.xlu0 %159
    %v161 = vmax.f32 %v72, %v73
    %162 = vmax.xlane.f32.xlu0 %v161
    %v163 = vpop.xlane.xlu0 %162
    %v164 = vmax.f32 %v74, %v75
    %165 = vmax.xlane.f32.xlu0 %v164
    %v166 = vpop.xlane.xlu0 %165
    %v167 = vmax.f32 %v76, %v77
    %168 = vmax.xlane.f32.xlu0 %v167
    %v169 = vpop.xlane.xlu0 %168
    %v170 = vmax.f32 %v78, %v79
    %171 = vmax.xlane.f32.xlu0 %v170
    %v172 = vpop.xlane.xlu0 %171
    %v173 = vmax.f32 %v80, %v81
    %174 = vmax.xlane.f32.xlu0 %v173
    %v175 = vpop.xlane.xlu0 %174
    %v176 = vmax.f32 %v82, %v83
    %177 = vmax.xlane.f32.xlu0 %v176
    %v178 = vpop.xlane.xlu0 %177
    %v179 = vmax.f32 %v84, %v85
    %180 = vmax.xlane.f32.xlu0 %v179
    %v181 = vpop.xlane.xlu0 %180
    %v182 = vsub.f32 %v22, %v88
    %v183 = vsub.f32 %v23, %v88
    %v184 = vsub.f32 %v24, %v91
    %v185 = vsub.f32 %v25, %v91
    %v186 = vsub.f32 %v26, %v94
    %v187 = vsub.f32 %v27, %v94
    %v188 = vsub.f32 %v28, %v97
    %v189 = vsub.f32 %v29, %v97
    %v190 = vsub.f32 %v30, %v100
    %v191 = vsub.f32 %v31, %v100
    %v192 = vsub.f32 %v32, %v103
    %v193 = vsub.f32 %v33, %v103
    %v194 = vsub.f32 %v34, %v106
    %v195 = vsub.f32 %v35, %v106
    %v196 = vsub.f32 %v36, %v109
    %v197 = vsub.f32 %v37, %v109
    %v198 = vsub.f32 %v38, %v112
    %v199 = vsub.f32 %v39, %v112
    %v200 = vsub.f32 %v40, %v115
    %v201 = vsub.f32 %v41, %v115
    %v202 = vsub.f32 %v42, %v118
    %v203 = vsub.f32 %v43, %v118
    %v204 = vsub.f32 %v44, %v121
    %v205 = vsub.f32 %v45, %v121
    %v206 = vsub.f32 %v46, %v124
    %v207 = vsub.f32 %v47, %v124
    %v208 = vsub.f32 %v48, %v127
    %v209 = vsub.f32 %v49, %v127
    %v210 = vsub.f32 %v50, %v130
    %v211 = vsub.f32 %v51, %v130
    %v212 = vsub.f32 %v52, %v133
    %v213 = vsub.f32 %v53, %v133
    %v214 = vsub.f32 %v54, %v136
    %v215 = vsub.f32 %v55, %v136
    %v216 = vsub.f32 %v56, %v139
    %v217 = vsub.f32 %v57, %v139
    %v218 = vsub.f32 %v58, %v142
    %v219 = vsub.f32 %v59, %v142
    %v220 = vsub.f32 %v60, %v145
    %v221 = vsub.f32 %v61, %v145
    %v222 = vsub.f32 %v62, %v148
    %v223 = vsub.f32 %v63, %v148
    %v224 = vsub.f32 %v64, %v151
    %v225 = vsub.f32 %v65, %v151
    %v226 = vsub.f32 %v66, %v154
    %v227 = vsub.f32 %v67, %v154
    %v228 = vsub.f32 %v68, %v157
    %v229 = vsub.f32 %v69, %v157
    %v230 = vsub.f32 %v70, %v160
    %v231 = vsub.f32 %v71, %v160
    %v232 = vsub.f32 %v72, %v163
    %v233 = vsub.f32 %v73, %v163
    %v234 = vsub.f32 %v74, %v166
    %v235 = vsub.f32 %v75, %v166
    %v236 = vsub.f32 %v76, %v169
    %v237 = vsub.f32 %v77, %v169
    %v238 = vsub.f32 %v78, %v172
    %v239 = vsub.f32 %v79, %v172
    %v240 = vsub.f32 %v80, %v175
    %v241 = vsub.f32 %v81, %v175
    %v242 = vsub.f32 %v82, %v178
    %v243 = vsub.f32 %v83, %v178
    %v244 = vsub.f32 %v84, %v181
    %v245 = vsub.f32 %v85, %v181
    %v246 = vmul.f32 %v182, 1.442695
    %v247 = vpow.pop %v246
    %v248 = vmul.f32 %v183, 1.442695
    %v249 = vpow.pop %v248
    %v250 = vmul.f32 %v184, 1.442695
    %v251 = vpow.pop %v250
    %v252 = vmul.f32 %v185, 1.442695
    %v253 = vpow.pop %v252
    %v254 = vmul.f32 %v186, 1.442695
    %v255 = vpow.pop %v254
    %v256 = vmul.f32 %v187, 1.442695
    %v257 = vpow.pop %v256
    %v258 = vmul.f32 %v188, 1.442695
    %v259 = vpow.pop %v258
    %v260 = vmul.f32 %v189, 1.442695
    %v261 = vpow.pop %v260
    %v262 = vmul.f32 %v190, 1.442695
    %v263 = vpow.pop %v262
    %v264 = vmul.f32 %v191, 1.442695
    %v265 = vpow.pop %v264
    %v266 = vmul.f32 %v192, 1.442695
    %v267 = vpow.pop %v266
    %v268 = vmul.f32 %v193, 1.442695
    %v269 = vpow.pop %v268
    %v270 = vmul.f32 %v194, 1.442695
    %v271 = vpow.pop %v270
    %v272 = vmul.f32 %v195, 1.442695
    %v273 = vpow.pop %v272
    %v274 = vmul.f32 %v196, 1.442695
    %v275 = vpow.pop %v274
    %v276 = vmul.f32 %v197, 1.442695
    %v277 = vpow.pop %v276
    %v278 = vmul.f32 %v198, 1.442695
    %v279 = vpow.pop %v278
    %v280 = vmul.f32 %v199, 1.442695
    %v281 = vpow.pop %v280
    %v282 = vmul.f32 %v200, 1.442695
    %v283 = vpow.pop %v282
    %v284 = vmul.f32 %v201, 1.442695
    %v285 = vpow.pop %v284
    %v286 = vmul.f32 %v202, 1.442695
    %v287 = vpow.pop %v286
    %v288 = vmul.f32 %v203, 1.442695
    %v289 = vpow.pop %v288
    %v290 = vmul.f32 %v204, 1.442695
    %v291 = vpow.pop %v290
    %v292 = vmul.f32 %v205, 1.442695
    %v293 = vpow.pop %v292
    %v294 = vmul.f32 %v206, 1.442695
    %v295 = vpow.pop %v294
    %v296 = vmul.f32 %v207, 1.442695
    %v297 = vpow.pop %v296
    %v298 = vmul.f32 %v208, 1.442695
    %v299 = vpow.pop %v298
    %v300 = vmul.f32 %v209, 1.442695
    %v301 = vpow.pop %v300
    %v302 = vmul.f32 %v210, 1.442695
    %v303 = vpow.pop %v302
    %v304 = vmul.f32 %v211, 1.442695
    %v305 = vpow.pop %v304
    %v306 = vmul.f32 %v212, 1.442695
    %v307 = vpow.pop %v306
    %v308 = vmul.f32 %v213, 1.442695
    %v309 = vpow.pop %v308
    %v310 = vmul.f32 %v214, 1.442695
    %v311 = vpow.pop %v310
    %v312 = vmul.f32 %v215, 1.442695
    %v313 = vpow.pop %v312
    %v314 = vmul.f32 %v216, 1.442695
    %v315 = vpow.pop %v314
    %v316 = vmul.f32 %v217, 1.442695
    %v317 = vpow.pop %v316
    %v318 = vmul.f32 %v218, 1.442695
    %v319 = vpow.pop %v318
    %v320 = vmul.f32 %v219, 1.442695
    %v321 = vpow.pop %v320
    %v322 = vmul.f32 %v220, 1.442695
    %v323 = vpow.pop %v322
    %v324 = vmul.f32 %v221, 1.442695
    %v325 = vpow.pop %v324
    %v326 = vmul.f32 %v222, 1.442695
    %v327 = vpow.pop %v326
    %v328 = vmul.f32 %v223, 1.442695
    %v329 = vpow.pop %v328
    %v330 = vmul.f32 %v224, 1.442695
    %v331 = vpow.pop %v330
    %v332 = vmul.f32 %v225, 1.442695
    %v333 = vpow.pop %v332
    %v334 = vmul.f32 %v226, 1.442695
    %v335 = vpow.pop %v334
    %v336 = vmul.f32 %v227, 1.442695
    %v337 = vpow.pop %v336
    %v338 = vmul.f32 %v228, 1.442695
    %v339 = vpow.pop %v338
    %v340 = vmul.f32 %v229, 1.442695
    %v341 = vpow.pop %v340
    %v342 = vmul.f32 %v230, 1.442695
    %v343 = vpow.pop %v342
    %v344 = vmul.f32 %v231, 1.442695
    %v345 = vpow.pop %v344
    %v346 = vmul.f32 %v232, 1.442695
    %v347 = vpow.pop %v346
    %v348 = vmul.f32 %v233, 1.442695
    %v349 = vpow.pop %v348
    %v350 = vmul.f32 %v234, 1.442695
    %v351 = vpow.pop %v350
    %v352 = vmul.f32 %v235, 1.442695
    %v353 = vpow.pop %v352
    %v354 = vmul.f32 %v236, 1.442695
    %v355 = vpow.pop %v354
    %v356 = vmul.f32 %v237, 1.442695
    %v357 = vpow.pop %v356
    %v358 = vmul.f32 %v238, 1.442695
    %v359 = vpow.pop %v358
    %v360 = vmul.f32 %v239, 1.442695
    %v361 = vpow.pop %v360
    %v362 = vmul.f32 %v240, 1.442695
    %v363 = vpow.pop %v362
    %v364 = vmul.f32 %v241, 1.442695
    %v365 = vpow.pop %v364
    %v366 = vmul.f32 %v242, 1.442695
    %v367 = vpow.pop %v366
    %v368 = vmul.f32 %v243, 1.442695
    %v369 = vpow.pop %v368
    %v370 = vmul.f32 %v244, 1.442695
    %v371 = vpow.pop %v370
    %v372 = vmul.f32 %v245, 1.442695
    %v373 = vpow.pop %v372
    %v374 = vadd.f32 %v247, %v249
    %375 = vadd.xlane.f32.xlu0 %v374
    %v376 = vpop.xlane.xlu0 %375
    %v377 = vadd.f32 %v251, %v253
    %378 = vadd.xlane.f32.xlu0 %v377
    %v379 = vpop.xlane.xlu0 %378
    %v380 = vadd.f32 %v255, %v257
    %381 = vadd.xlane.f32.xlu0 %v380
    %v382 = vpop.xlane.xlu0 %381
    %v383 = vadd.f32 %v259, %v261
    %384 = vadd.xlane.f32.xlu0 %v383
    %v385 = vpop.xlane.xlu0 %384
    %v386 = vadd.f32 %v263, %v265
    %387 = vadd.xlane.f32.xlu0 %v386
    %v388 = vpop.xlane.xlu0 %387
    %v389 = vadd.f32 %v267, %v269
    %390 = vadd.xlane.f32.xlu0 %v389
    %v391 = vpop.xlane.xlu0 %390
    %v392 = vadd.f32 %v271, %v273
    %393 = vadd.xlane.f32.xlu0 %v392
    %v394 = vpop.xlane.xlu0 %393
    %v395 = vadd.f32 %v275, %v277
    %396 = vadd.xlane.f32.xlu0 %v395
    %v397 = vpop.xlane.xlu0 %396
    %v398 = vadd.f32 %v279, %v281
    %399 = vadd.xlane.f32.xlu0 %v398
    %v400 = vpop.xlane.xlu0 %399
    %v401 = vadd.f32 %v283, %v285
    %402 = vadd.xlane.f32.xlu0 %v401
    %v403 = vpop.xlane.xlu0 %402
    %v404 = vadd.f32 %v287, %v289
    %405 = vadd.xlane.f32.xlu0 %v404
    %v406 = vpop.xlane.xlu0 %405
    %v407 = vadd.f32 %v291, %v293
    %408 = vadd.xlane.f32.xlu0 %v407
    %v409 = vpop.xlane.xlu0 %408
    %v410 = vadd.f32 %v295, %v297
    %411 = vadd.xlane.f32.xlu0 %v410
    %v412 = vpop.xlane.xlu0 %411
    %v413 = vadd.f32 %v299, %v301
    %414 = vadd.xlane.f32.xlu0 %v413
    %v415 = vpop.xlane.xlu0 %414
    %v416 = vadd.f32 %v303, %v305
    %417 = vadd.xlane.f32.xlu0 %v416
    %v418 = vpop.xlane.xlu0 %417
    %v419 = vadd.f32 %v307, %v309
    %420 = vadd.xlane.f32.xlu0 %v419
    %v421 = vpop.xlane.xlu0 %420
    %v422 = vadd.f32 %v311, %v313
    %423 = vadd.xlane.f32.xlu0 %v422
    %v424 = vpop.xlane.xlu0 %423
    %v425 = vadd.f32 %v315, %v317
    %426 = vadd.xlane.f32.xlu0 %v425
    %v427 = vpop.xlane.xlu0 %426
    %v428 = vadd.f32 %v319, %v321
    %429 = vadd.xlane.f32.xlu0 %v428
    %v430 = vpop.xlane.xlu0 %429
    %v431 = vadd.f32 %v323, %v325
    %432 = vadd.xlane.f32.xlu0 %v431
    %v433 = vpop.xlane.xlu0 %432
    %v434 = vadd.f32 %v327, %v329
    %435 = vadd.xlane.f32.xlu0 %v434
    %v436 = vpop.xlane.xlu0 %435
    %v437 = vadd.f32 %v331, %v333
    %438 = vadd.xlane.f32.xlu0 %v437
    %v439 = vpop.xlane.xlu0 %438
    %v440 = vadd.f32 %v335, %v337
    %441 = vadd.xlane.f32.xlu0 %v440
    %v442 = vpop.xlane.xlu0 %441
    %v443 = vadd.f32 %v339, %v341
    %444 = vadd.xlane.f32.xlu0 %v443
    %v445 = vpop.xlane.xlu0 %444
    %v446 = vadd.f32 %v343, %v345
    %447 = vadd.xlane.f32.xlu0 %v446
    %v448 = vpop.xlane.xlu0 %447
    %v449 = vadd.f32 %v347, %v349
    %450 = vadd.xlane.f32.xlu0 %v449
    %v451 = vpop.xlane.xlu0 %450
    %v452 = vadd.f32 %v351, %v353
    %453 = vadd.xlane.f32.xlu0 %v452
    %v454 = vpop.xlane.xlu0 %453
    %v455 = vadd.f32 %v355, %v357
    %456 = vadd.xlane.f32.xlu0 %v455
    %v457 = vpop.xlane.xlu0 %456
    %v458 = vadd.f32 %v359, %v361
    %459 = vadd.xlane.f32.xlu0 %v458
    %v460 = vpop.xlane.xlu0 %459
    %v461 = vadd.f32 %v363, %v365
    %462 = vadd.xlane.f32.xlu0 %v461
    %v463 = vpop.xlane.xlu0 %462
    %v464 = vadd.f32 %v367, %v369
    %465 = vadd.xlane.f32.xlu0 %v464
    %v466 = vpop.xlane.xlu0 %465
    %v467 = vadd.f32 %v371, %v373
    %468 = vadd.xlane.f32.xlu0 %v467
    %v469 = vpop.xlane.xlu0 %468
    %v470 = vlaneseq
    %v471 = vshrl.u32 %v470, 7
    %v472 = vadd.s32 %v471, 8
    %v473 = vadd.s32 %v471, 16
    %v474 = vadd.s32 %v471, 24
    %v475 = vadd.s32 %v471, 32
    %v476 = vadd.s32 %v471, 40
    %v477 = vadd.s32 %v471, 48
    %v478 = vadd.s32 %v471, 56
    %v479 = vadd.s32 %v471, 64
    %v480 = vadd.s32 %v471, 72
    %v481 = vadd.s32 %v471, 80
    %v482 = vadd.s32 %v471, 88
    %v483 = vadd.s32 %v471, 96
    %v484 = vadd.s32 %v471, 104
    %v485 = vadd.s32 %v471, 112
    %v486 = vadd.s32 %v471, 120
    %v487 = vadd.s32 %v471, 128
    %v488 = vadd.s32 %v471, 136
    %v489 = vadd.s32 %v471, 144
    %v490 = vadd.s32 %v471, 152
    %v491 = vadd.s32 %v471, 160
    %v492 = vadd.s32 %v471, 168
    %v493 = vadd.s32 %v471, 176
    %v494 = vadd.s32 %v471, 184
    %v495 = vadd.s32 %v471, 192
    %v496 = vadd.s32 %v471, 200
    %v497 = vadd.s32 %v471, 208
    %v498 = vadd.s32 %v471, 216
    %v499 = vadd.s32 %v471, 224
    %v500 = vadd.s32 %v471, 232
    %v501 = vadd.s32 %v471, 240
    %v502 = vadd.s32 %v471, 248
    %v503 = vlaneseq
    %v504 = vand.u32 %v503, 127
    %v505 = vadd.s32 %v504, 128
    %vm506 = vcmp.eq.s32.totalorder %v471, %v504
    %vm507 = vcmp.eq.s32.totalorder %v471, %v505
    %vm508 = vcmp.eq.s32.totalorder %v472, %v504
    %vm509 = vcmp.eq.s32.totalorder %v472, %v505
    %vm510 = vcmp.eq.s32.totalorder %v473, %v504
    %vm511 = vcmp.eq.s32.totalorder %v473, %v505
    %vm512 = vcmp.eq.s32.totalorder %v474, %v504
    %vm513 = vcmp.eq.s32.totalorder %v474, %v505
    %vm514 = vcmp.eq.s32.totalorder %v475, %v504
    %vm515 = vcmp.eq.s32.totalorder %v475, %v505
    %vm516 = vcmp.eq.s32.totalorder %v476, %v504
    %vm517 = vcmp.eq.s32.totalorder %v476, %v505
    %vm518 = vcmp.eq.s32.totalorder %v477, %v504
    %vm519 = vcmp.eq.s32.totalorder %v477, %v505
    %vm520 = vcmp.eq.s32.totalorder %v478, %v504
    %vm521 = vcmp.eq.s32.totalorder %v478, %v505
    %vm522 = vcmp.eq.s32.totalorder %v479, %v504
    %vm523 = vcmp.eq.s32.totalorder %v479, %v505
    %vm524 = vcmp.eq.s32.totalorder %v480, %v504
    %vm525 = vcmp.eq.s32.totalorder %v480, %v505
    %vm526 = vcmp.eq.s32.totalorder %v481, %v504
    %vm527 = vcmp.eq.s32.totalorder %v481, %v505
    %vm528 = vcmp.eq.s32.totalorder %v482, %v504
    %vm529 = vcmp.eq.s32.totalorder %v482, %v505
    %vm530 = vcmp.eq.s32.totalorder %v483, %v504
    %vm531 = vcmp.eq.s32.totalorder %v483, %v505
    %vm532 = vcmp.eq.s32.totalorder %v484, %v504
    %vm533 = vcmp.eq.s32.totalorder %v484, %v505
    %vm534 = vcmp.eq.s32.totalorder %v485, %v504
    %vm535 = vcmp.eq.s32.totalorder %v485, %v505
    %vm536 = vcmp.eq.s32.totalorder %v486, %v504
    %vm537 = vcmp.eq.s32.totalorder %v486, %v505
    %vm538 = vcmp.eq.s32.totalorder %v487, %v504
    %vm539 = vcmp.eq.s32.totalorder %v487, %v505
    %vm540 = vcmp.eq.s32.totalorder %v488, %v504
    %vm541 = vcmp.eq.s32.totalorder %v488, %v505
    %vm542 = vcmp.eq.s32.totalorder %v489, %v504
    %vm543 = vcmp.eq.s32.totalorder %v489, %v505
    %vm544 = vcmp.eq.s32.totalorder %v490, %v504
    %vm545 = vcmp.eq.s32.totalorder %v490, %v505
    %vm546 = vcmp.eq.s32.totalorder %v491, %v504
    %vm547 = vcmp.eq.s32.totalorder %v491, %v505
    %vm548 = vcmp.eq.s32.totalorder %v492, %v504
    %vm549 = vcmp.eq.s32.totalorder %v492, %v505
    %vm550 = vcmp.eq.s32.totalorder %v493, %v504
    %vm551 = vcmp.eq.s32.totalorder %v493, %v505
    %vm552 = vcmp.eq.s32.totalorder %v494, %v504
    %vm553 = vcmp.eq.s32.totalorder %v494, %v505
    %vm554 = vcmp.eq.s32.totalorder %v495, %v504
    %vm555 = vcmp.eq.s32.totalorder %v495, %v505
    %vm556 = vcmp.eq.s32.totalorder %v496, %v504
    %vm557 = vcmp.eq.s32.totalorder %v496, %v505
    %vm558 = vcmp.eq.s32.totalorder %v497, %v504
    %vm559 = vcmp.eq.s32.totalorder %v497, %v505
    %vm560 = vcmp.eq.s32.totalorder %v498, %v504
    %vm561 = vcmp.eq.s32.totalorder %v498, %v505
    %vm562 = vcmp.eq.s32.totalorder %v499, %v504
    %vm563 = vcmp.eq.s32.totalorder %v499, %v505
    %vm564 = vcmp.eq.s32.totalorder %v500, %v504
    %vm565 = vcmp.eq.s32.totalorder %v500, %v505
    %vm566 = vcmp.eq.s32.totalorder %v501, %v504
    %vm567 = vcmp.eq.s32.totalorder %v501, %v505
    %vm568 = vcmp.eq.s32.totalorder %v502, %v504
    %vm569 = vcmp.eq.s32.totalorder %v502, %v505
    %v570 = vsel %vm506, %v22, 0.0
    %v571 = vsel %vm507, %v23, 0.0
    %v572 = vsel %vm508, %v24, 0.0
    %v573 = vsel %vm509, %v25, 0.0
    %v574 = vsel %vm510, %v26, 0.0
    %v575 = vsel %vm511, %v27, 0.0
    %v576 = vsel %vm512, %v28, 0.0
    %v577 = vsel %vm513, %v29, 0.0
    %v578 = vsel %vm514, %v30, 0.0
    %v579 = vsel %vm515, %v31, 0.0
    %v580 = vsel %vm516, %v32, 0.0
    %v581 = vsel %vm517, %v33, 0.0
    %v582 = vsel %vm518, %v34, 0.0
    %v583 = vsel %vm519, %v35, 0.0
    %v584 = vsel %vm520, %v36, 0.0
    %v585 = vsel %vm521, %v37, 0.0
    %v586 = vsel %vm522, %v38, 0.0
    %v587 = vsel %vm523, %v39, 0.0
    %v588 = vsel %vm524, %v40, 0.0
    %v589 = vsel %vm525, %v41, 0.0
    %v590 = vsel %vm526, %v42, 0.0
    %v591 = vsel %vm527, %v43, 0.0
    %v592 = vsel %vm528, %v44, 0.0
    %v593 = vsel %vm529, %v45, 0.0
    %v594 = vsel %vm530, %v46, 0.0
    %v595 = vsel %vm531, %v47, 0.0
    %v596 = vsel %vm532, %v48, 0.0
    %v597 = vsel %vm533, %v49, 0.0
    %v598 = vsel %vm534, %v50, 0.0
    %v599 = vsel %vm535, %v51, 0.0
    %v600 = vsel %vm536, %v52, 0.0
    %v601 = vsel %vm537, %v53, 0.0
    %v602 = vsel %vm538, %v54, 0.0
    %v603 = vsel %vm539, %v55, 0.0
    %v604 = vsel %vm540, %v56, 0.0
    %v605 = vsel %vm541, %v57, 0.0
    %v606 = vsel %vm542, %v58, 0.0
    %v607 = vsel %vm543, %v59, 0.0
    %v608 = vsel %vm544, %v60, 0.0
    %v609 = vsel %vm545, %v61, 0.0
    %v610 = vsel %vm546, %v62, 0.0
    %v611 = vsel %vm547, %v63, 0.0
    %v612 = vsel %vm548, %v64, 0.0
    %v613 = vsel %vm549, %v65, 0.0
    %v614 = vsel %vm550, %v66, 0.0
    %v615 = vsel %vm551, %v67, 0.0
    %v616 = vsel %vm552, %v68, 0.0
    %v617 = vsel %vm553, %v69, 0.0
    %v618 = vsel %vm554, %v70, 0.0
    %v619 = vsel %vm555, %v71, 0.0
    %v620 = vsel %vm556, %v72, 0.0
    %v621 = vsel %vm557, %v73, 0.0
    %v622 = vsel %vm558, %v74, 0.0
    %v623 = vsel %vm559, %v75, 0.0
    %v624 = vsel %vm560, %v76, 0.0
    %v625 = vsel %vm561, %v77, 0.0
    %v626 = vsel %vm562, %v78, 0.0
    %v627 = vsel %vm563, %v79, 0.0
    %v628 = vsel %vm564, %v80, 0.0
    %v629 = vsel %vm565, %v81, 0.0
    %v630 = vsel %vm566, %v82, 0.0
    %v631 = vsel %vm567, %v83, 0.0
    %v632 = vsel %vm568, %v84, 0.0
    %v633 = vsel %vm569, %v85, 0.0
    %v634 = vadd.f32 %v570, %v571
    %635 = vadd.xlane.f32.xlu0 %v634
    %v636 = vpop.xlane.xlu0 %635
    %v637 = vadd.f32 %v572, %v573
    %638 = vadd.xlane.f32.xlu0 %v637
    %v639 = vpop.xlane.xlu0 %638
    %v640 = vadd.f32 %v574, %v575
    %641 = vadd.xlane.f32.xlu0 %v640
    %v642 = vpop.xlane.xlu0 %641
    %v643 = vadd.f32 %v576, %v577
    %644 = vadd.xlane.f32.xlu0 %v643
    %v645 = vpop.xlane.xlu0 %644
    %v646 = vadd.f32 %v578, %v579
    %647 = vadd.xlane.f32.xlu0 %v646
    %v648 = vpop.xlane.xlu0 %647
    %v649 = vadd.f32 %v580, %v581
    %650 = vadd.xlane.f32.xlu0 %v649
    %v651 = vpop.xlane.xlu0 %650
    %v652 = vadd.f32 %v582, %v583
    %653 = vadd.xlane.f32.xlu0 %v652
    %v654 = vpop.xlane.xlu0 %653
    %v655 = vadd.f32 %v584, %v585
    %656 = vadd.xlane.f32.xlu0 %v655
    %v657 = vpop.xlane.xlu0 %656
    %v658 = vadd.f32 %v586, %v587
    %659 = vadd.xlane.f32.xlu0 %v658
    %v660 = vpop.xlane.xlu0 %659
    %v661 = vadd.f32 %v588, %v589
    %662 = vadd.xlane.f32.xlu0 %v661
    %v663 = vpop.xlane.xlu0 %662
    %v664 = vadd.f32 %v590, %v591
    %665 = vadd.xlane.f32.xlu0 %v664
    %v666 = vpop.xlane.xlu0 %665
    %v667 = vadd.f32 %v592, %v593
    %668 = vadd.xlane.f32.xlu0 %v667
    %v669 = vpop.xlane.xlu0 %668
    %v670 = vadd.f32 %v594, %v595
    %671 = vadd.xlane.f32.xlu0 %v670
    %v672 = vpop.xlane.xlu0 %671
    %v673 = vadd.f32 %v596, %v597
    %674 = vadd.xlane.f32.xlu0 %v673
    %v675 = vpop.xlane.xlu0 %674
    %v676 = vadd.f32 %v598, %v599
    %677 = vadd.xlane.f32.xlu0 %v676
    %v678 = vpop.xlane.xlu0 %677
    %v679 = vadd.f32 %v600, %v601
    %680 = vadd.xlane.f32.xlu0 %v679
    %v681 = vpop.xlane.xlu0 %680
    %v682 = vadd.f32 %v602, %v603
    %683 = vadd.xlane.f32.xlu0 %v682
    %v684 = vpop.xlane.xlu0 %683
    %v685 = vadd.f32 %v604, %v605
    %686 = vadd.xlane.f32.xlu0 %v685
    %v687 = vpop.xlane.xlu0 %686
    %v688 = vadd.f32 %v606, %v607
    %689 = vadd.xlane.f32.xlu0 %v688
    %v690 = vpop.xlane.xlu0 %689
    %v691 = vadd.f32 %v608, %v609
    %692 = vadd.xlane.f32.xlu0 %v691
    %v693 = vpop.xlane.xlu0 %692
    %v694 = vadd.f32 %v610, %v611
    %695 = vadd.xlane.f32.xlu0 %v694
    %v696 = vpop.xlane.xlu0 %695
    %v697 = vadd.f32 %v612, %v613
    %698 = vadd.xlane.f32.xlu0 %v697
    %v699 = vpop.xlane.xlu0 %698
    %v700 = vadd.f32 %v614, %v615
    %701 = vadd.xlane.f32.xlu0 %v700
    %v702 = vpop.xlane.xlu0 %701
    %v703 = vadd.f32 %v616, %v617
    %704 = vadd.xlane.f32.xlu0 %v703
    %v705 = vpop.xlane.xlu0 %704
    %v706 = vadd.f32 %v618, %v619
    %707 = vadd.xlane.f32.xlu0 %v706
    %v708 = vpop.xlane.xlu0 %707
    %v709 = vadd.f32 %v620, %v621
    %710 = vadd.xlane.f32.xlu0 %v709
    %v711 = vpop.xlane.xlu0 %710
    %v712 = vadd.f32 %v622, %v623
    %713 = vadd.xlane.f32.xlu0 %v712
    %v714 = vpop.xlane.xlu0 %713
    %v715 = vadd.f32 %v624, %v625
    %716 = vadd.xlane.f32.xlu0 %v715
    %v717 = vpop.xlane.xlu0 %716
    %v718 = vadd.f32 %v626, %v627
    %719 = vadd.xlane.f32.xlu0 %v718
    %v720 = vpop.xlane.xlu0 %719
    %v721 = vadd.f32 %v628, %v629
    %722 = vadd.xlane.f32.xlu0 %v721
    %v723 = vpop.xlane.xlu0 %722
    %v724 = vadd.f32 %v630, %v631
    %725 = vadd.xlane.f32.xlu0 %v724
    %v726 = vpop.xlane.xlu0 %725
    %v727 = vadd.f32 %v632, %v633
    %728 = vadd.xlane.f32.xlu0 %v727
    %v729 = vpop.xlane.xlu0 %728
    %v730 = vmul.f32 %v22, 0.5
    %v731 = vmul.f32 %v23, 0.5
    %v732 = vmul.f32 %v24, 0.5
    %v733 = vmul.f32 %v25, 0.5
    %v734 = vmul.f32 %v26, 0.5
    %v735 = vmul.f32 %v27, 0.5
    %v736 = vmul.f32 %v28, 0.5
    %v737 = vmul.f32 %v29, 0.5
    %v738 = vmul.f32 %v30, 0.5
    %v739 = vmul.f32 %v31, 0.5
    %v740 = vmul.f32 %v32, 0.5
    %v741 = vmul.f32 %v33, 0.5
    %v742 = vmul.f32 %v34, 0.5
    %v743 = vmul.f32 %v35, 0.5
    %v744 = vmul.f32 %v36, 0.5
    %v745 = vmul.f32 %v37, 0.5
    %v746 = vmul.f32 %v38, 0.5
    %v747 = vmul.f32 %v39, 0.5
    %v748 = vmul.f32 %v40, 0.5
    %v749 = vmul.f32 %v41, 0.5
    %v750 = vmul.f32 %v42, 0.5
    %v751 = vmul.f32 %v43, 0.5
    %v752 = vmul.f32 %v44, 0.5
    %v753 = vmul.f32 %v45, 0.5
    %v754 = vmul.f32 %v46, 0.5
    %v755 = vmul.f32 %v47, 0.5
    %v756 = vmul.f32 %v48, 0.5
    %v757 = vmul.f32 %v49, 0.5
    %v758 = vmul.f32 %v50, 0.5
    %v759 = vmul.f32 %v51, 0.5
    %v760 = vmul.f32 %v52, 0.5
    %v761 = vmul.f32 %v53, 0.5
    %v762 = vmul.f32 %v54, 0.5
    %v763 = vmul.f32 %v55, 0.5
    %v764 = vmul.f32 %v56, 0.5
    %v765 = vmul.f32 %v57, 0.5
    %v766 = vmul.f32 %v58, 0.5
    %v767 = vmul.f32 %v59, 0.5
    %v768 = vmul.f32 %v60, 0.5
    %v769 = vmul.f32 %v61, 0.5
    %v770 = vmul.f32 %v62, 0.5
    %v771 = vmul.f32 %v63, 0.5
    %v772 = vmul.f32 %v64, 0.5
    %v773 = vmul.f32 %v65, 0.5
    %v774 = vmul.f32 %v66, 0.5
    %v775 = vmul.f32 %v67, 0.5
    %v776 = vmul.f32 %v68, 0.5
    %v777 = vmul.f32 %v69, 0.5
    %v778 = vmul.f32 %v70, 0.5
    %v779 = vmul.f32 %v71, 0.5
    %v780 = vmul.f32 %v72, 0.5
    %v781 = vmul.f32 %v73, 0.5
    %v782 = vmul.f32 %v74, 0.5
    %v783 = vmul.f32 %v75, 0.5
    %v784 = vmul.f32 %v76, 0.5
    %v785 = vmul.f32 %v77, 0.5
    %v786 = vmul.f32 %v78, 0.5
    %v787 = vmul.f32 %v79, 0.5
    %v788 = vmul.f32 %v80, 0.5
    %v789 = vmul.f32 %v81, 0.5
    %v790 = vmul.f32 %v82, 0.5
    %v791 = vmul.f32 %v83, 0.5
    %v792 = vmul.f32 %v84, 0.5
    %v793 = vmul.f32 %v85, 0.5
    %v794 = vmul.f32 %v636, 0.5
    %v795 = vmul.f32 %v639, 0.5
    %v796 = vmul.f32 %v642, 0.5
    %v797 = vmul.f32 %v645, 0.5
    %v798 = vmul.f32 %v648, 0.5
    %v799 = vmul.f32 %v651, 0.5
    %v800 = vmul.f32 %v654, 0.5
    %v801 = vmul.f32 %v657, 0.5
    %v802 = vmul.f32 %v660, 0.5
    %v803 = vmul.f32 %v663, 0.5
    %v804 = vmul.f32 %v666, 0.5
    %v805 = vmul.f32 %v669, 0.5
    %v806 = vmul.f32 %v672, 0.5
    %v807 = vmul.f32 %v675, 0.5
    %v808 = vmul.f32 %v678, 0.5
    %v809 = vmul.f32 %v681, 0.5
    %v810 = vmul.f32 %v684, 0.5
    %v811 = vmul.f32 %v687, 0.5
    %v812 = vmul.f32 %v690, 0.5
    %v813 = vmul.f32 %v693, 0.5
    %v814 = vmul.f32 %v696, 0.5
    %v815 = vmul.f32 %v699, 0.5
    %v816 = vmul.f32 %v702, 0.5
    %v817 = vmul.f32 %v705, 0.5
    %v818 = vmul.f32 %v708, 0.5
    %v819 = vmul.f32 %v711, 0.5
    %v820 = vmul.f32 %v714, 0.5
    %v821 = vmul.f32 %v717, 0.5
    %v822 = vmul.f32 %v720, 0.5
    %v823 = vmul.f32 %v723, 0.5
    %v824 = vmul.f32 %v726, 0.5
    %v825 = vmul.f32 %v729, 0.5
    %v826 = vsub.f32 %v730, %v794
    %v827 = vsub.f32 %v731, %v794
    %v828 = vsub.f32 %v732, %v795
    %v829 = vsub.f32 %v733, %v795
    %v830 = vsub.f32 %v734, %v796
    %v831 = vsub.f32 %v735, %v796
    %v832 = vsub.f32 %v736, %v797
    %v833 = vsub.f32 %v737, %v797
    %v834 = vsub.f32 %v738, %v798
    %v835 = vsub.f32 %v739, %v798
    %v836 = vsub.f32 %v740, %v799
    %v837 = vsub.f32 %v741, %v799
    %v838 = vsub.f32 %v742, %v800
    %v839 = vsub.f32 %v743, %v800
    %v840 = vsub.f32 %v744, %v801
    %v841 = vsub.f32 %v745, %v801
    %v842 = vsub.f32 %v746, %v802
    %v843 = vsub.f32 %v747, %v802
    %v844 = vsub.f32 %v748, %v803
    %v845 = vsub.f32 %v749, %v803
    %v846 = vsub.f32 %v750, %v804
    %v847 = vsub.f32 %v751, %v804
    %v848 = vsub.f32 %v752, %v805
    %v849 = vsub.f32 %v753, %v805
    %v850 = vsub.f32 %v754, %v806
    %v851 = vsub.f32 %v755, %v806
    %v852 = vsub.f32 %v756, %v807
    %v853 = vsub.f32 %v757, %v807
    %v854 = vsub.f32 %v758, %v808
    %v855 = vsub.f32 %v759, %v808
    %v856 = vsub.f32 %v760, %v809
    %v857 = vsub.f32 %v761, %v809
    %v858 = vsub.f32 %v762, %v810
    %v859 = vsub.f32 %v763, %v810
    %v860 = vsub.f32 %v764, %v811
    %v861 = vsub.f32 %v765, %v811
    %v862 = vsub.f32 %v766, %v812
    %v863 = vsub.f32 %v767, %v812
    %v864 = vsub.f32 %v768, %v813
    %v865 = vsub.f32 %v769, %v813
    %v866 = vsub.f32 %v770, %v814
    %v867 = vsub.f32 %v771, %v814
    %v868 = vsub.f32 %v772, %v815
    %v869 = vsub.f32 %v773, %v815
    %v870 = vsub.f32 %v774, %v816
    %v871 = vsub.f32 %v775, %v816
    %v872 = vsub.f32 %v776, %v817
    %v873 = vsub.f32 %v777, %v817
    %v874 = vsub.f32 %v778, %v818
    %v875 = vsub.f32 %v779, %v818
    %v876 = vsub.f32 %v780, %v819
    %v877 = vsub.f32 %v781, %v819
    %v878 = vsub.f32 %v782, %v820
    %v879 = vsub.f32 %v783, %v820
    %v880 = vsub.f32 %v784, %v821
    %v881 = vsub.f32 %v785, %v821
    %v882 = vsub.f32 %v786, %v822
    %v883 = vsub.f32 %v787, %v822
    %v884 = vsub.f32 %v788, %v823
    %v885 = vsub.f32 %v789, %v823
    %v886 = vsub.f32 %v790, %v824
    %v887 = vsub.f32 %v791, %v824
    %v888 = vsub.f32 %v792, %v825
    %v889 = vsub.f32 %v793, %v825
    %v890 = vtanh.pop %v826
    %v891 = vtanh.pop %v827
    %v892 = vtanh.pop %v828
    %v893 = vtanh.pop %v829
    %v894 = vtanh.pop %v830
    %v895 = vtanh.pop %v831
    %v896 = vtanh.pop %v832
    %v897 = vtanh.pop %v833
    %v898 = vtanh.pop %v834
    %v899 = vtanh.pop %v835
    %v900 = vtanh.pop %v836
    %v901 = vtanh.pop %v837
    %v902 = vtanh.pop %v838
    %v903 = vtanh.pop %v839
    %v904 = vtanh.pop %v840
    %v905 = vtanh.pop %v841
    %v906 = vtanh.pop %v842
    %v907 = vtanh.pop %v843
    %v908 = vtanh.pop %v844
    %v909 = vtanh.pop %v845
    %v910 = vtanh.pop %v846
    %v911 = vtanh.pop %v847
    %v912 = vtanh.pop %v848
    %v913 = vtanh.pop %v849
    %v914 = vtanh.pop %v850
    %v915 = vtanh.pop %v851
    %v916 = vtanh.pop %v852
    %v917 = vtanh.pop %v853
    %v918 = vtanh.pop %v854
    %v919 = vtanh.pop %v855
    %v920 = vtanh.pop %v856
    %v921 = vtanh.pop %v857
    %v922 = vtanh.pop %v858
    %v923 = vtanh.pop %v859
    %v924 = vtanh.pop %v860
    %v925 = vtanh.pop %v861
    %v926 = vtanh.pop %v862
    %v927 = vtanh.pop %v863
    %v928 = vtanh.pop %v864
    %v929 = vtanh.pop %v865
    %v930 = vtanh.pop %v866
    %v931 = vtanh.pop %v867
    %v932 = vtanh.pop %v868
    %v933 = vtanh.pop %v869
    %v934 = vtanh.pop %v870
    %v935 = vtanh.pop %v871
    %v936 = vtanh.pop %v872
    %v937 = vtanh.pop %v873
    %v938 = vtanh.pop %v874
    %v939 = vtanh.pop %v875
    %v940 = vtanh.pop %v876
    %v941 = vtanh.pop %v877
    %v942 = vtanh.pop %v878
    %v943 = vtanh.pop %v879
    %v944 = vtanh.pop %v880
    %v945 = vtanh.pop %v881
    %v946 = vtanh.pop %v882
    %v947 = vtanh.pop %v883
    %v948 = vtanh.pop %v884
    %v949 = vtanh.pop %v885
    %v950 = vtanh.pop %v886
    %v951 = vtanh.pop %v887
    %v952 = vtanh.pop %v888
    %v953 = vtanh.pop %v889
    %v954 = vmul.f32 %v730, %v22
    %v955 = vmul.f32 %v731, %v23
    %v956 = vmul.f32 %v732, %v24
    %v957 = vmul.f32 %v733, %v25
    %v958 = vmul.f32 %v734, %v26
    %v959 = vmul.f32 %v735, %v27
    %v960 = vmul.f32 %v736, %v28
    %v961 = vmul.f32 %v737, %v29
    %v962 = vmul.f32 %v738, %v30
    %v963 = vmul.f32 %v739, %v31
    %v964 = vmul.f32 %v740, %v32
    %v965 = vmul.f32 %v741, %v33
    %v966 = vmul.f32 %v742, %v34
    %v967 = vmul.f32 %v743, %v35
    %v968 = vmul.f32 %v744, %v36
    %v969 = vmul.f32 %v745, %v37
    %v970 = vmul.f32 %v746, %v38
    %v971 = vmul.f32 %v747, %v39
    %v972 = vmul.f32 %v748, %v40
    %v973 = vmul.f32 %v749, %v41
    %v974 = vmul.f32 %v750, %v42
    %v975 = vmul.f32 %v751, %v43
    %v976 = vmul.f32 %v752, %v44
    %v977 = vmul.f32 %v753, %v45
    %v978 = vmul.f32 %v754, %v46
    %v979 = vmul.f32 %v755, %v47
    %v980 = vmul.f32 %v756, %v48
    %v981 = vmul.f32 %v757, %v49
    %v982 = vmul.f32 %v758, %v50
    %v983 = vmul.f32 %v759, %v51
    %v984 = vmul.f32 %v760, %v52
    %v985 = vmul.f32 %v761, %v53
    %v986 = vmul.f32 %v762, %v54
    %v987 = vmul.f32 %v763, %v55
    %v988 = vmul.f32 %v764, %v56
    %v989 = vmul.f32 %v765, %v57
    %v990 = vmul.f32 %v766, %v58
    %v991 = vmul.f32 %v767, %v59
    %v992 = vmul.f32 %v768, %v60
    %v993 = vmul.f32 %v769, %v61
    %v994 = vmul.f32 %v770, %v62
    %v995 = vmul.f32 %v771, %v63
    %v996 = vmul.f32 %v772, %v64
    %v997 = vmul.f32 %v773, %v65
    %v998 = vmul.f32 %v774, %v66
    %v999 = vmul.f32 %v775, %v67
    %v1000 = vmul.f32 %v776, %v68
    %v1001 = vmul.f32 %v777, %v69
    %v1002 = vmul.f32 %v778, %v70
    %v1003 = vmul.f32 %v779, %v71
    %v1004 = vmul.f32 %v780, %v72
    %v1005 = vmul.f32 %v781, %v73
    %v1006 = vmul.f32 %v782, %v74
    %v1007 = vmul.f32 %v783, %v75
    %v1008 = vmul.f32 %v784, %v76
    %v1009 = vmul.f32 %v785, %v77
    %v1010 = vmul.f32 %v786, %v78
    %v1011 = vmul.f32 %v787, %v79
    %v1012 = vmul.f32 %v788, %v80
    %v1013 = vmul.f32 %v789, %v81
    %v1014 = vmul.f32 %v790, %v82
    %v1015 = vmul.f32 %v791, %v83
    %v1016 = vmul.f32 %v792, %v84
    %v1017 = vmul.f32 %v793, %v85
    %v1018 = vtanh.pop %v954
    %v1019 = vtanh.pop %v955
    %v1020 = vtanh.pop %v956
    %v1021 = vtanh.pop %v957
    %v1022 = vtanh.pop %v958
    %v1023 = vtanh.pop %v959
    %v1024 = vtanh.pop %v960
    %v1025 = vtanh.pop %v961
    %v1026 = vtanh.pop %v962
    %v1027 = vtanh.pop %v963
    %v1028 = vtanh.pop %v964
    %v1029 = vtanh.pop %v965
    %v1030 = vtanh.pop %v966
    %v1031 = vtanh.pop %v967
    %v1032 = vtanh.pop %v968
    %v1033 = vtanh.pop %v969
    %v1034 = vtanh.pop %v970
    %v1035 = vtanh.pop %v971
    %v1036 = vtanh.pop %v972
    %v1037 = vtanh.pop %v973
    %v1038 = vtanh.pop %v974
    %v1039 = vtanh.pop %v975
    %v1040 = vtanh.pop %v976
    %v1041 = vtanh.pop %v977
    %v1042 = vtanh.pop %v978
    %v1043 = vtanh.pop %v979
    %v1044 = vtanh.pop %v980
    %v1045 = vtanh.pop %v981
    %v1046 = vtanh.pop %v982
    %v1047 = vtanh.pop %v983
    %v1048 = vtanh.pop %v984
    %v1049 = vtanh.pop %v985
    %v1050 = vtanh.pop %v986
    %v1051 = vtanh.pop %v987
    %v1052 = vtanh.pop %v988
    %v1053 = vtanh.pop %v989
    %v1054 = vtanh.pop %v990
    %v1055 = vtanh.pop %v991
    %v1056 = vtanh.pop %v992
    %v1057 = vtanh.pop %v993
    %v1058 = vtanh.pop %v994
    %v1059 = vtanh.pop %v995
    %v1060 = vtanh.pop %v996
    %v1061 = vtanh.pop %v997
    %v1062 = vtanh.pop %v998
    %v1063 = vtanh.pop %v999
    %v1064 = vtanh.pop %v1000
    %v1065 = vtanh.pop %v1001
    %v1066 = vtanh.pop %v1002
    %v1067 = vtanh.pop %v1003
    %v1068 = vtanh.pop %v1004
    %v1069 = vtanh.pop %v1005
    %v1070 = vtanh.pop %v1006
    %v1071 = vtanh.pop %v1007
    %v1072 = vtanh.pop %v1008
    %v1073 = vtanh.pop %v1009
    %v1074 = vtanh.pop %v1010
    %v1075 = vtanh.pop %v1011
    %v1076 = vtanh.pop %v1012
    %v1077 = vtanh.pop %v1013
    %v1078 = vtanh.pop %v1014
    %v1079 = vtanh.pop %v1015
    %v1080 = vtanh.pop %v1016
    %v1081 = vtanh.pop %v1017
    %v1082 = vadd.f32 %v890, %v1018
    %v1083 = vadd.f32 %v891, %v1019
    %v1084 = vadd.f32 %v892, %v1020
    %v1085 = vadd.f32 %v893, %v1021
    %v1086 = vadd.f32 %v894, %v1022
    %v1087 = vadd.f32 %v895, %v1023
    %v1088 = vadd.f32 %v896, %v1024
    %v1089 = vadd.f32 %v897, %v1025
    %v1090 = vadd.f32 %v898, %v1026
    %v1091 = vadd.f32 %v899, %v1027
    %v1092 = vadd.f32 %v900, %v1028
    %v1093 = vadd.f32 %v901, %v1029
    %v1094 = vadd.f32 %v902, %v1030
    %v1095 = vadd.f32 %v903, %v1031
    %v1096 = vadd.f32 %v904, %v1032
    %v1097 = vadd.f32 %v905, %v1033
    %v1098 = vadd.f32 %v906, %v1034
    %v1099 = vadd.f32 %v907, %v1035
    %v1100 = vadd.f32 %v908, %v1036
    %v1101 = vadd.f32 %v909, %v1037
    %v1102 = vadd.f32 %v910, %v1038
    %v1103 = vadd.f32 %v911, %v1039
    %v1104 = vadd.f32 %v912, %v1040
    %v1105 = vadd.f32 %v913, %v1041
    %v1106 = vadd.f32 %v914, %v1042
    %v1107 = vadd.f32 %v915, %v1043
    %v1108 = vadd.f32 %v916, %v1044
    %v1109 = vadd.f32 %v917, %v1045
    %v1110 = vadd.f32 %v918, %v1046
    %v1111 = vadd.f32 %v919, %v1047
    %v1112 = vadd.f32 %v920, %v1048
    %v1113 = vadd.f32 %v921, %v1049
    %v1114 = vadd.f32 %v922, %v1050
    %v1115 = vadd.f32 %v923, %v1051
    %v1116 = vadd.f32 %v924, %v1052
    %v1117 = vadd.f32 %v925, %v1053
    %v1118 = vadd.f32 %v926, %v1054
    %v1119 = vadd.f32 %v927, %v1055
    %v1120 = vadd.f32 %v928, %v1056
    %v1121 = vadd.f32 %v929, %v1057
    %v1122 = vadd.f32 %v930, %v1058
    %v1123 = vadd.f32 %v931, %v1059
    %v1124 = vadd.f32 %v932, %v1060
    %v1125 = vadd.f32 %v933, %v1061
    %v1126 = vadd.f32 %v934, %v1062
    %v1127 = vadd.f32 %v935, %v1063
    %v1128 = vadd.f32 %v936, %v1064
    %v1129 = vadd.f32 %v937, %v1065
    %v1130 = vadd.f32 %v938, %v1066
    %v1131 = vadd.f32 %v939, %v1067
    %v1132 = vadd.f32 %v940, %v1068
    %v1133 = vadd.f32 %v941, %v1069
    %v1134 = vadd.f32 %v942, %v1070
    %v1135 = vadd.f32 %v943, %v1071
    %v1136 = vadd.f32 %v944, %v1072
    %v1137 = vadd.f32 %v945, %v1073
    %v1138 = vadd.f32 %v946, %v1074
    %v1139 = vadd.f32 %v947, %v1075
    %v1140 = vadd.f32 %v948, %v1076
    %v1141 = vadd.f32 %v949, %v1077
    %v1142 = vadd.f32 %v950, %v1078
    %v1143 = vadd.f32 %v951, %v1079
    %v1144 = vadd.f32 %v952, %v1080
    %v1145 = vadd.f32 %v953, %v1081
    %v1146 = vmul.f32 %v247, %v1082
    %v1147 = vmul.f32 %v249, %v1083
    %v1148 = vmul.f32 %v251, %v1084
    %v1149 = vmul.f32 %v253, %v1085
    %v1150 = vmul.f32 %v255, %v1086
    %v1151 = vmul.f32 %v257, %v1087
    %v1152 = vmul.f32 %v259, %v1088
    %v1153 = vmul.f32 %v261, %v1089
    %v1154 = vmul.f32 %v263, %v1090
    %v1155 = vmul.f32 %v265, %v1091
    %v1156 = vmul.f32 %v267, %v1092
    %v1157 = vmul.f32 %v269, %v1093
    %v1158 = vmul.f32 %v271, %v1094
    %v1159 = vmul.f32 %v273, %v1095
    %v1160 = vmul.f32 %v275, %v1096
    %v1161 = vmul.f32 %v277, %v1097
    %v1162 = vmul.f32 %v279, %v1098
    %v1163 = vmul.f32 %v281, %v1099
    %v1164 = vmul.f32 %v283, %v1100
    %v1165 = vmul.f32 %v285, %v1101
    %v1166 = vmul.f32 %v287, %v1102
    %v1167 = vmul.f32 %v289, %v1103
    %v1168 = vmul.f32 %v291, %v1104
    %v1169 = vmul.f32 %v293, %v1105
    %v1170 = vmul.f32 %v295, %v1106
    %v1171 = vmul.f32 %v297, %v1107
    %v1172 = vmul.f32 %v299, %v1108
    %v1173 = vmul.f32 %v301, %v1109
    %v1174 = vmul.f32 %v303, %v1110
    %v1175 = vmul.f32 %v305, %v1111
    %v1176 = vmul.f32 %v307, %v1112
    %v1177 = vmul.f32 %v309, %v1113
    %v1178 = vmul.f32 %v311, %v1114
    %v1179 = vmul.f32 %v313, %v1115
    %v1180 = vmul.f32 %v315, %v1116
    %v1181 = vmul.f32 %v317, %v1117
    %v1182 = vmul.f32 %v319, %v1118
    %v1183 = vmul.f32 %v321, %v1119
    %v1184 = vmul.f32 %v323, %v1120
    %v1185 = vmul.f32 %v325, %v1121
    %v1186 = vmul.f32 %v327, %v1122
    %v1187 = vmul.f32 %v329, %v1123
    %v1188 = vmul.f32 %v331, %v1124
    %v1189 = vmul.f32 %v333, %v1125
    %v1190 = vmul.f32 %v335, %v1126
    %v1191 = vmul.f32 %v337, %v1127
    %v1192 = vmul.f32 %v339, %v1128
    %v1193 = vmul.f32 %v341, %v1129
    %v1194 = vmul.f32 %v343, %v1130
    %v1195 = vmul.f32 %v345, %v1131
    %v1196 = vmul.f32 %v347, %v1132
    %v1197 = vmul.f32 %v349, %v1133
    %v1198 = vmul.f32 %v351, %v1134
    %v1199 = vmul.f32 %v353, %v1135
    %v1200 = vmul.f32 %v355, %v1136
    %v1201 = vmul.f32 %v357, %v1137
    %v1202 = vmul.f32 %v359, %v1138
    %v1203 = vmul.f32 %v361, %v1139
    %v1204 = vmul.f32 %v363, %v1140
    %v1205 = vmul.f32 %v365, %v1141
    %v1206 = vmul.f32 %v367, %v1142
    %v1207 = vmul.f32 %v369, %v1143
    %v1208 = vmul.f32 %v371, %v1144
    %v1209 = vmul.f32 %v373, %v1145
    %v1210 = vadd.f32 %v1146, %v1147
    %1211 = vadd.xlane.f32.xlu0 %v1210
    %v1212 = vpop.xlane.xlu0 %1211
    %v1213 = vadd.f32 %v1148, %v1149
    %1214 = vadd.xlane.f32.xlu0 %v1213
    %v1215 = vpop.xlane.xlu0 %1214
    %v1216 = vadd.f32 %v1150, %v1151
    %1217 = vadd.xlane.f32.xlu0 %v1216
    %v1218 = vpop.xlane.xlu0 %1217
    %v1219 = vadd.f32 %v1152, %v1153
    %1220 = vadd.xlane.f32.xlu0 %v1219
    %v1221 = vpop.xlane.xlu0 %1220
    %v1222 = vadd.f32 %v1154, %v1155
    %1223 = vadd.xlane.f32.xlu0 %v1222
    %v1224 = vpop.xlane.xlu0 %1223
    %v1225 = vadd.f32 %v1156, %v1157
    %1226 = vadd.xlane.f32.xlu0 %v1225
    %v1227 = vpop.xlane.xlu0 %1226
    %v1228 = vadd.f32 %v1158, %v1159
    %1229 = vadd.xlane.f32.xlu0 %v1228
    %v1230 = vpop.xlane.xlu0 %1229
    %v1231 = vadd.f32 %v1160, %v1161
    %1232 = vadd.xlane.f32.xlu0 %v1231
    %v1233 = vpop.xlane.xlu0 %1232
    %v1234 = vadd.f32 %v1162, %v1163
    %1235 = vadd.xlane.f32.xlu0 %v1234
    %v1236 = vpop.xlane.xlu0 %1235
    %v1237 = vadd.f32 %v1164, %v1165
    %1238 = vadd.xlane.f32.xlu0 %v1237
    %v1239 = vpop.xlane.xlu0 %1238
    %v1240 = vadd.f32 %v1166, %v1167
    %1241 = vadd.xlane.f32.xlu0 %v1240
    %v1242 = vpop.xlane.xlu0 %1241
    %v1243 = vadd.f32 %v1168, %v1169
    %1244 = vadd.xlane.f32.xlu0 %v1243
    %v1245 = vpop.xlane.xlu0 %1244
    %v1246 = vadd.f32 %v1170, %v1171
    %1247 = vadd.xlane.f32.xlu0 %v1246
    %v1248 = vpop.xlane.xlu0 %1247
    %v1249 = vadd.f32 %v1172, %v1173
    %1250 = vadd.xlane.f32.xlu0 %v1249
    %v1251 = vpop.xlane.xlu0 %1250
    %v1252 = vadd.f32 %v1174, %v1175
    %1253 = vadd.xlane.f32.xlu0 %v1252
    %v1254 = vpop.xlane.xlu0 %1253
    %v1255 = vadd.f32 %v1176, %v1177
    %1256 = vadd.xlane.f32.xlu0 %v1255
    %v1257 = vpop.xlane.xlu0 %1256
    %v1258 = vadd.f32 %v1178, %v1179
    %1259 = vadd.xlane.f32.xlu0 %v1258
    %v1260 = vpop.xlane.xlu0 %1259
    %v1261 = vadd.f32 %v1180, %v1181
    %1262 = vadd.xlane.f32.xlu0 %v1261
    %v1263 = vpop.xlane.xlu0 %1262
    %v1264 = vadd.f32 %v1182, %v1183
    %1265 = vadd.xlane.f32.xlu0 %v1264
    %v1266 = vpop.xlane.xlu0 %1265
    %v1267 = vadd.f32 %v1184, %v1185
    %1268 = vadd.xlane.f32.xlu0 %v1267
    %v1269 = vpop.xlane.xlu0 %1268
    %v1270 = vadd.f32 %v1186, %v1187
    %1271 = vadd.xlane.f32.xlu0 %v1270
    %v1272 = vpop.xlane.xlu0 %1271
    %v1273 = vadd.f32 %v1188, %v1189
    %1274 = vadd.xlane.f32.xlu0 %v1273
    %v1275 = vpop.xlane.xlu0 %1274
    %v1276 = vadd.f32 %v1190, %v1191
    %1277 = vadd.xlane.f32.xlu0 %v1276
    %v1278 = vpop.xlane.xlu0 %1277
    %v1279 = vadd.f32 %v1192, %v1193
    %1280 = vadd.xlane.f32.xlu0 %v1279
    %v1281 = vpop.xlane.xlu0 %1280
    %v1282 = vadd.f32 %v1194, %v1195
    %1283 = vadd.xlane.f32.xlu0 %v1282
    %v1284 = vpop.xlane.xlu0 %1283
    %v1285 = vadd.f32 %v1196, %v1197
    %1286 = vadd.xlane.f32.xlu0 %v1285
    %v1287 = vpop.xlane.xlu0 %1286
    %v1288 = vadd.f32 %v1198, %v1199
    %1289 = vadd.xlane.f32.xlu0 %v1288
    %v1290 = vpop.xlane.xlu0 %1289
    %v1291 = vadd.f32 %v1200, %v1201
    %1292 = vadd.xlane.f32.xlu0 %v1291
    %v1293 = vpop.xlane.xlu0 %1292
    %v1294 = vadd.f32 %v1202, %v1203
    %1295 = vadd.xlane.f32.xlu0 %v1294
    %v1296 = vpop.xlane.xlu0 %1295
    %v1297 = vadd.f32 %v1204, %v1205
    %1298 = vadd.xlane.f32.xlu0 %v1297
    %v1299 = vpop.xlane.xlu0 %1298
    %v1300 = vadd.f32 %v1206, %v1207
    %1301 = vadd.xlane.f32.xlu0 %v1300
    %v1302 = vpop.xlane.xlu0 %1301
    %v1303 = vadd.f32 %v1208, %v1209
    %1304 = vadd.xlane.f32.xlu0 %v1303
    %v1305 = vpop.xlane.xlu0 %1304
    %v1306 = vmul.f32 %v1212, 0.5
    %v1307 = vmul.f32 %v1215, 0.5
    %v1308 = vmul.f32 %v1218, 0.5
    %v1309 = vmul.f32 %v1221, 0.5
    %v1310 = vmul.f32 %v1224, 0.5
    %v1311 = vmul.f32 %v1227, 0.5
    %v1312 = vmul.f32 %v1230, 0.5
    %v1313 = vmul.f32 %v1233, 0.5
    %v1314 = vmul.f32 %v1236, 0.5
    %v1315 = vmul.f32 %v1239, 0.5
    %v1316 = vmul.f32 %v1242, 0.5
    %v1317 = vmul.f32 %v1245, 0.5
    %v1318 = vmul.f32 %v1248, 0.5
    %v1319 = vmul.f32 %v1251, 0.5
    %v1320 = vmul.f32 %v1254, 0.5
    %v1321 = vmul.f32 %v1257, 0.5
    %v1322 = vmul.f32 %v1260, 0.5
    %v1323 = vmul.f32 %v1263, 0.5
    %v1324 = vmul.f32 %v1266, 0.5
    %v1325 = vmul.f32 %v1269, 0.5
    %v1326 = vmul.f32 %v1272, 0.5
    %v1327 = vmul.f32 %v1275, 0.5
    %v1328 = vmul.f32 %v1278, 0.5
    %v1329 = vmul.f32 %v1281, 0.5
    %v1330 = vmul.f32 %v1284, 0.5
    %v1331 = vmul.f32 %v1287, 0.5
    %v1332 = vmul.f32 %v1290, 0.5
    %v1333 = vmul.f32 %v1293, 0.5
    %v1334 = vmul.f32 %v1296, 0.5
    %v1335 = vmul.f32 %v1299, 0.5
    %v1336 = vmul.f32 %v1302, 0.5
    %v1337 = vmul.f32 %v1305, 0.5
    %v1338 = vrcp.pop %v376
    %v1339 = vrcp.pop %v379
    %v1340 = vrcp.pop %v382
    %v1341 = vrcp.pop %v385
    %v1342 = vrcp.pop %v388
    %v1343 = vrcp.pop %v391
    %v1344 = vrcp.pop %v394
    %v1345 = vrcp.pop %v397
    %v1346 = vrcp.pop %v400
    %v1347 = vrcp.pop %v403
    %v1348 = vrcp.pop %v406
    %v1349 = vrcp.pop %v409
    %v1350 = vrcp.pop %v412
    %v1351 = vrcp.pop %v415
    %v1352 = vrcp.pop %v418
    %v1353 = vrcp.pop %v421
    %v1354 = vrcp.pop %v424
    %v1355 = vrcp.pop %v427
    %v1356 = vrcp.pop %v430
    %v1357 = vrcp.pop %v433
    %v1358 = vrcp.pop %v436
    %v1359 = vrcp.pop %v439
    %v1360 = vrcp.pop %v442
    %v1361 = vrcp.pop %v445
    %v1362 = vrcp.pop %v448
    %v1363 = vrcp.pop %v451
    %v1364 = vrcp.pop %v454
    %v1365 = vrcp.pop %v457
    %v1366 = vrcp.pop %v460
    %v1367 = vrcp.pop %v463
    %v1368 = vrcp.pop %v466
    %v1369 = vrcp.pop %v469
    %v1370 = vmul.f32 %v1306, %v1338
    %v1371 = vmul.f32 %v1307, %v1339
    %v1372 = vmul.f32 %v1308, %v1340
    %v1373 = vmul.f32 %v1309, %v1341
    %v1374 = vmul.f32 %v1310, %v1342
    %v1375 = vmul.f32 %v1311, %v1343
    %v1376 = vmul.f32 %v1312, %v1344
    %v1377 = vmul.f32 %v1313, %v1345
    %v1378 = vmul.f32 %v1314, %v1346
    %v1379 = vmul.f32 %v1315, %v1347
    %v1380 = vmul.f32 %v1316, %v1348
    %v1381 = vmul.f32 %v1317, %v1349
    %v1382 = vmul.f32 %v1318, %v1350
    %v1383 = vmul.f32 %v1319, %v1351
    %v1384 = vmul.f32 %v1320, %v1352
    %v1385 = vmul.f32 %v1321, %v1353
    %v1386 = vmul.f32 %v1322, %v1354
    %v1387 = vmul.f32 %v1323, %v1355
    %v1388 = vmul.f32 %v1324, %v1356
    %v1389 = vmul.f32 %v1325, %v1357
    %v1390 = vmul.f32 %v1326, %v1358
    %v1391 = vmul.f32 %v1327, %v1359
    %v1392 = vmul.f32 %v1328, %v1360
    %v1393 = vmul.f32 %v1329, %v1361
    %v1394 = vmul.f32 %v1330, %v1362
    %v1395 = vmul.f32 %v1331, %v1363
    %v1396 = vmul.f32 %v1332, %v1364
    %v1397 = vmul.f32 %v1333, %v1365
    %v1398 = vmul.f32 %v1334, %v1366
    %v1399 = vmul.f32 %v1335, %v1367
    %v1400 = vmul.f32 %v1336, %v1368
    %v1401 = vmul.f32 %v1337, %v1369
    %v1402 = vadd.f32 %v1370, 1.0
    %v1403 = vadd.f32 %v1371, 1.0
    %v1404 = vadd.f32 %v1372, 1.0
    %v1405 = vadd.f32 %v1373, 1.0
    %v1406 = vadd.f32 %v1374, 1.0
    %v1407 = vadd.f32 %v1375, 1.0
    %v1408 = vadd.f32 %v1376, 1.0
    %v1409 = vadd.f32 %v1377, 1.0
    %v1410 = vadd.f32 %v1378, 1.0
    %v1411 = vadd.f32 %v1379, 1.0
    %v1412 = vadd.f32 %v1380, 1.0
    %v1413 = vadd.f32 %v1381, 1.0
    %v1414 = vadd.f32 %v1382, 1.0
    %v1415 = vadd.f32 %v1383, 1.0
    %v1416 = vadd.f32 %v1384, 1.0
    %v1417 = vadd.f32 %v1385, 1.0
    %v1418 = vadd.f32 %v1386, 1.0
    %v1419 = vadd.f32 %v1387, 1.0
    %v1420 = vadd.f32 %v1388, 1.0
    %v1421 = vadd.f32 %v1389, 1.0
    %v1422 = vadd.f32 %v1390, 1.0
    %v1423 = vadd.f32 %v1391, 1.0
    %v1424 = vadd.f32 %v1392, 1.0
    %v1425 = vadd.f32 %v1393, 1.0
    %v1426 = vadd.f32 %v1394, 1.0
    %v1427 = vadd.f32 %v1395, 1.0
    %v1428 = vadd.f32 %v1396, 1.0
    %v1429 = vadd.f32 %v1397, 1.0
    %v1430 = vadd.f32 %v1398, 1.0
    %v1431 = vadd.f32 %v1399, 1.0
    %v1432 = vadd.f32 %v1400, 1.0
    %v1433 = vadd.f32 %v1401, 1.0
    %vm1434 = vcmask 7168
    %v1435 = vsel %vm1434, %v1402, 0.0
    %v1436 = vsel %vm1434, %v1403, 0.0
    %v1437 = vadd.f32 %v1435, %v1436
    %v1438 = vsel %vm1434, %v1404, 0.0
    %v1439 = vadd.f32 %v1437, %v1438
    %v1440 = vsel %vm1434, %v1405, 0.0
    %v1441 = vadd.f32 %v1439, %v1440
    %v1442 = vsel %vm1434, %v1406, 0.0
    %v1443 = vadd.f32 %v1441, %v1442
    %v1444 = vsel %vm1434, %v1407, 0.0
    %v1445 = vadd.f32 %v1443, %v1444
    %v1446 = vsel %vm1434, %v1408, 0.0
    %v1447 = vadd.f32 %v1445, %v1446
    %v1448 = vsel %vm1434, %v1409, 0.0
    %v1449 = vadd.f32 %v1447, %v1448
    %v1450 = vsel %vm1434, %v1410, 0.0
    %v1451 = vadd.f32 %v1449, %v1450
    %v1452 = vsel %vm1434, %v1411, 0.0
    %v1453 = vadd.f32 %v1451, %v1452
    %v1454 = vsel %vm1434, %v1412, 0.0
    %v1455 = vadd.f32 %v1453, %v1454
    %v1456 = vsel %vm1434, %v1413, 0.0
    %v1457 = vadd.f32 %v1455, %v1456
    %v1458 = vsel %vm1434, %v1414, 0.0
    %v1459 = vadd.f32 %v1457, %v1458
    %v1460 = vsel %vm1434, %v1415, 0.0
    %v1461 = vadd.f32 %v1459, %v1460
    %v1462 = vsel %vm1434, %v1416, 0.0
    %v1463 = vadd.f32 %v1461, %v1462
    %v1464 = vsel %vm1434, %v1417, 0.0
    %v1465 = vadd.f32 %v1463, %v1464
    %v1466 = vsel %vm1434, %v1418, 0.0
    %v1467 = vadd.f32 %v1465, %v1466
    %v1468 = vsel %vm1434, %v1419, 0.0
    %v1469 = vadd.f32 %v1467, %v1468
    %v1470 = vsel %vm1434, %v1420, 0.0
    %v1471 = vadd.f32 %v1469, %v1470
    %v1472 = vsel %vm1434, %v1421, 0.0
    %v1473 = vadd.f32 %v1471, %v1472
    %v1474 = vsel %vm1434, %v1422, 0.0
    %v1475 = vadd.f32 %v1473, %v1474
    %v1476 = vsel %vm1434, %v1423, 0.0
    %v1477 = vadd.f32 %v1475, %v1476
    %v1478 = vsel %vm1434, %v1424, 0.0
    %v1479 = vadd.f32 %v1477, %v1478
    %v1480 = vsel %vm1434, %v1425, 0.0
    %v1481 = vadd.f32 %v1479, %v1480
    %v1482 = vsel %vm1434, %v1426, 0.0
    %v1483 = vadd.f32 %v1481, %v1482
    %v1484 = vsel %vm1434, %v1427, 0.0
    %v1485 = vadd.f32 %v1483, %v1484
    %v1486 = vsel %vm1434, %v1428, 0.0
    %v1487 = vadd.f32 %v1485, %v1486
    %v1488 = vsel %vm1434, %v1429, 0.0
    %v1489 = vadd.f32 %v1487, %v1488
    %v1490 = vsel %vm1434, %v1430, 0.0
    %v1491 = vadd.f32 %v1489, %v1490
    %v1492 = vsel %vm1434, %v1431, 0.0
    %v1493 = vadd.f32 %v1491, %v1492
    %v1494 = vsel %vm1434, %v1432, 0.0
    %v1495 = vadd.f32 %v1493, %v1494
    %v1496 = vsel %vm1434, %v1433, 0.0
    %v1497 = vadd.f32 %v1495, %v1496
    %1498 = vadd.xlane.f32.xlu0 %v1497
    %v1499 = vpop.xlane.xlu0 %1498
    %v1500 = vrot.slane %v1499, 4
    %v1501 = vadd.f32 %v1499, %v1500
    %v1502 = vrot.slane %v1501, 2
    %v1503 = vadd.f32 %v1501, %v1502
    %v1504 = vrot.slane %v1503, 1
    %v1505 = vadd.f32 %v1503, %v1504
    %s1506 = vtos %v1505
    %vm1507 = vcmp.eq.s32.totalorder %v471, 0
    %vm1508 = vcmp.eq.s32.totalorder %v504, 0
    %vm1509 = vmand %vm1507, %vm1508
    %v1510 = vstv %s1506
    %v1511 = vsel %vm1509, %v1510, 0.0
    %1512 = vst [vmem:[%s1] sm:$0xff] %v1511
    // Predicated region
    $region10: #{top1_max_loss.1} parent=1 // pred_check
      _
    $region11: #{top1_max_loss.1} parent=1 // pred_check_branch
      %1514 = sbr.rel (0) target = $region13
    $region12: #{top1_max_loss.1} parent=1 // pred_region
      _
    $region13: #{top1_max_loss.1} parent=1 // pred_fallthru
      _
    // Predicated region
    $region14: #{top1_max_loss.1} parent=1 // pred_check
      _
    $region15: #{top1_max_loss.1} parent=1 // pred_check_branch
      %1516 = sbr.rel (0) target = $region17
    $region16: #{top1_max_loss.1} parent=1 // pred_region
      _
    $region17: #{top1_max_loss.1} parent=1 // pred_fallthru
      _
    %1517 = vsyncpa [#allocation3], 1

</llo_original>
